<compile_context>
chip_gen: v6e
topology: v6e:2x2x1
jax: 0.10.0
libtpu: 0.0.40
codegen_flags: <defaults>
</compile_context>

<pallas_src>
import functools

import jax
import jax.numpy as jnp
from jax.experimental import pallas as pl
from jax.experimental.pallas import tpu as pltpu


def _torus_conv_bn_kernel(x_ref, w_ref, shift_ref, o_ref):
    """One batch-group (NB stacked boards) per grid step.

    x_ref:     (NB*Hp, Wp*Cin)           bf16  NB padded boards stacked along rows
    w_ref:     (KH, Wp*Cin, W_out*Cout)  bf16  banded weights, BN scale folded (resident)
    shift_ref: (1, W_out*Cout)           f32   folded conv-bias + BN shift (resident)
    o_ref:     (NB*Hp, W_out*Cout)       out   lane-dense output tile
    """
    kh_total = w_ref.shape[0]
    rows = o_ref.shape[0]
    nout = o_ref.shape[1]
    m = rows - (kh_total - 1)  # rows whose full KH window lies inside this block

    # Initialize the accumulator with the folded bias/BN shift (saves the
    # zeros materialization and one full VPU add pass), then accumulate KH
    # row-shifted matmuls on the MXU with f32 accumulation.
    acc = jnp.broadcast_to(shift_ref[...], (m, nout)).astype(jnp.float32)
    for kh in range(kh_total):  # static unroll (KH is small)
        acc = acc + jnp.dot(
            x_ref[pl.ds(kh, m), :], w_ref[kh],
            preferred_element_type=jnp.float32)

    o_ref[pl.ds(0, m), :] = acc.astype(o_ref.dtype)
    if kh_total > 1:
        # Last (KH-1) rows are cross-board seam rows; the wrapper discards
        # them.  Write zeros so the whole block is defined.
        o_ref[pl.ds(m, kh_total - 1), :] = jnp.zeros(
            (kh_total - 1, nout), o_ref.dtype)


def fold_torus_conv2d_params(weight, bias, gamma=None, beta=None,
                             run_mean=None, run_var=None, *, board_hw,
                             eps=1e-5):
    """One-time weight-side work (hoisted out of the per-call path).

    Returns (w_big, shift_big):
      w_big[kh, wi*Cin + ci, wo*Cout + co] = weight[co, ci, kh, wi - wo] * scale[co]
      shift_big = beta + (bias - mean) * scale, tiled over W_out (lane-dense).
    """
    Cout, Cin, KH, KW = weight.shape
    H, W = board_hw
    ew = KW // 2
    Wp = W + 2 * ew
    W_out = Wp - KW + 1

    if gamma is None:  # bn=False: identity affine
        scale = jnp.ones((Cout,), jnp.float32)
        shift = bias.astype(jnp.float32)
    else:              # eval-mode BatchNorm folded into scale/shift
        inv_std = jax.lax.rsqrt(run_var + eps)
        scale = gamma * inv_std
        shift = beta + (bias - run_mean) * scale

    w_kkc = jnp.transpose(weight * scale[:, None, None, None], (2, 3, 1, 0))  # (KH,KW,Cin,Cout)
    wi = jnp.arange(Wp)[:, None]      # padded input column
    wo = jnp.arange(W_out)[None, :]   # output column
    kw_idx = wi - wo                  # (Wp, W_out)
    valid = (kw_idx >= 0) & (kw_idx < KW)
    g = w_kkc[:, jnp.clip(kw_idx, 0, KW - 1)]           # (KH, Wp, W_out, Cin, Cout)
    g = jnp.where(valid[None, :, :, None, None], g, 0.0)
    w_big = jnp.transpose(g, (0, 1, 3, 2, 4)).reshape(KH, Wp * Cin, W_out * Cout)
    w_big = w_big.astype(jnp.bfloat16)
    shift_big = jnp.tile(shift, W_out).reshape(1, W_out * Cout).astype(jnp.float32)
    return w_big, shift_big


def _boards_per_step(n, hp, target_rows=256):
    """Pick NB so NB*Hp >= ~256 rows (MXU fill) and the block stays 8-aligned."""
    nb = max(1, -(-target_rows // hp))
    if nb >= n:
        return n                      # single step: block == whole array, no constraint
    while nb < n and (nb * hp) % 8 != 0:
        nb += 1                       # grid > 1: sublane dim must divide by 8
    return min(nb, n)


def torus_conv2d(x, w_big, shift_big, *, kernel_hw, out_dtype=jnp.float32,
                 boards_per_step=None):
    """Forward pass of TorusConv2d (circular-pad conv + eval-mode BatchNorm)."""
    N, Cin, H, W = x.shape
    KH, KW = kernel_hw
    eh, ew = KH // 2, KW // 2
    Hp, Wp = H + 2 * eh, W + 2 * ew
    H_out, W_out = Hp - KH + 1, Wp - KW + 1   # == H, W for odd kernel sizes
    nout = w_big.shape[2]
    Cout = nout // W_out
    assert w_big.shape == (KH, Wp * Cin, W_out * Cout)

    nb = boards_per_step if boards_per_step else _boards_per_step(N, Hp)
    n_pad = -(-N // nb) * nb
    num_steps = n_pad // nb
    block_rows = nb * Hp

    # Circular ("torus") padding — identical to the torch.cat wrap — then
    # NHWC with (Wp, Cin) flattened into the lanes, all boards stacked into a
    # single tall (N_pad*Hp, Wp*Cin) bf16 slab.
    x_pad = jnp.pad(x, ((0, 0), (0, 0), (eh, eh), (ew, ew)), mode="wrap")
    if n_pad != N:
        x_pad = jnp.pad(x_pad, ((0, n_pad - N), (0, 0), (0, 0), (0, 0)))
    x_flat = jnp.transpose(x_pad, (0, 2, 3, 1)).reshape(n_pad * Hp, Wp * Cin)
    x_flat = x_flat.astype(jnp.bfloat16)
    # TODO(synk): if the surrounding model keeps activations in NHWC bf16 the
    # transpose/cast above disappears and the wrapper is only the wrap pad.

    out_itemsize = jnp.dtype(out_dtype).itemsize
    vmem_bytes = (2 * block_rows * Wp * Cin * 2          # x (double-buffered bf16)
                  + KH * Wp * Cin * nout * 2             # resident banded weights
                  + 2 * block_rows * nout * out_itemsize  # out (double-buffered)
                  + nout * 4)                             # shift
    # TODO(synk): for large Cin/Cout, tile the W_out*Cout axis with a second
    # grid dimension instead of keeping the full banded weight resident
    # (v7x only has 64 MiB of physical VMEM).
    assert vmem_bytes < 48 * 1024 * 1024, (
        "banded weight / activation blocks too large for VMEM; tile W_out*Cout")
    vmem_limit = int(min(48 * 1024 * 1024,
                         max(2 * vmem_bytes, 16 * 1024 * 1024)))

    out2d = pl.pallas_call(
        _torus_conv_bn_kernel,
        out_shape=jax.ShapeDtypeStruct((n_pad * Hp, nout), out_dtype),
        grid_spec=pltpu.PrefetchScalarGridSpec(
            num_scalar_prefetch=0,
            grid=(num_steps,),
            in_specs=[
                # NB stacked boards per step (one contiguous >=40 KB DMA).
                pl.BlockSpec((block_rows, Wp * Cin), lambda g: (g, 0)),
                # Banded weights: constant index map -> resident in VMEM.
                pl.BlockSpec((KH, Wp * Cin, nout), lambda g: (0, 0, 0)),
                # Folded bias/BN shift: resident.
                pl.BlockSpec((1, nout), lambda g: (0, 0)),
            ],
            out_specs=pl.BlockSpec((block_rows, nout), lambda g: (g, 0)),
        ),
        compiler_params=pltpu.CompilerParams(
            dimension_semantics=("parallel",),  # v7x: both TCs split the groups
            vmem_limit_bytes=vmem_limit,
        ),
    )(x_flat, w_big, shift_big)

    # Drop seam/padding rows and padded batch entries, back to NCHW.
    out = out2d.reshape(n_pad, Hp, W_out, Cout)[:N, :H_out]
    return jnp.transpose(out, (0, 3, 1, 2))


def reference_torus_conv2d(x, weight, bias, gamma, beta, run_mean, run_var,
                           eps=1e-5):
    """Pure-JAX f32 reference mirroring the PyTorch forward (eval-mode BN)."""
    KH, KW = weight.shape[2], weight.shape[3]
    eh, ew = KH // 2, KW // 2
    xp = jnp.pad(x, ((0, 0), (0, 0), (eh, eh), (ew, ew)), mode="wrap")
    y = jax.lax.conv_general_dilated(
        xp, weight, window_strides=(1, 1), padding="VALID",
        dimension_numbers=("NCHW", "OIHW", "NCHW"))
    y = y + bias[None, :, None, None]
    y = (y - run_mean[None, :, None, None]) * (
        1.0 / jnp.sqrt(run_var[None, :, None, None] + eps))
    return y * gamma[None, :, None, None] + beta[None, :, None, None]


if __name__ == "__main__":
    # Small shapes consistent with the module: batch=2, Cin=4, Cout=8, 16x16 board, 3x3 kernel.
    N, Cin, Cout, H, W = 2, 4, 8, 16, 16
    KH, KW = 3, 3

    key = jax.random.PRNGKey(0)
    kx, kw, kb, kg, kbe, km, kv = jax.random.split(key, 7)

    x = jax.random.normal(kx, (N, Cin, H, W), dtype=jnp.float32)
    weight = jax.random.normal(kw, (Cout, Cin, KH, KW), dtype=jnp.float32) * 0.1
    bias = jax.random.normal(kb, (Cout,), dtype=jnp.float32) * 0.1
    gamma = jax.random.uniform(kg, (Cout,), dtype=jnp.float32,
                               minval=0.5, maxval=1.5)
    beta = jax.random.normal(kbe, (Cout,), dtype=jnp.float32) * 0.1
    run_mean = jax.random.normal(km, (Cout,), dtype=jnp.float32) * 0.1
    run_var = jax.random.uniform(kv, (Cout,), dtype=jnp.float32,
                                 minval=0.5, maxval=1.5)

    # One-time weight-side folding (hoisted out of the per-call path).
    w_big, shift_big = fold_torus_conv2d_params(
        weight, bias, gamma, beta, run_mean, run_var, board_hw=(H, W))
    w_big = jax.block_until_ready(w_big)
    shift_big = jax.block_until_ready(shift_big)

    fwd = jax.jit(functools.partial(torus_conv2d, kernel_hw=(KH, KW)))
    out = jax.block_until_ready(fwd(x, w_big, shift_big))

    ref = reference_torus_conv2d(x, weight, bias, gamma, beta, run_mean, run_var)
    assert out.shape == (N, Cout, H, W)
    # Tolerance accounts for bf16 matmul inputs (f32 accumulation) vs f32 reference.
    assert jnp.allclose(out, ref, rtol=2e-2, atol=2e-2), "mismatch vs reference"

    print("KERNEL_OK")
</pallas_src>

<mosaic_0001>
module attributes {stable_mosaic.version = 11 : i64} {
  func.func @_torus_conv_bn_kernel(%arg0: i32, %arg1: memref<36x72xbf16, #tpu.memory_space<vmem>>, %arg2: memref<3x72x128xbf16, #tpu.memory_space<vmem>>, %arg3: memref<1x128xf32, #tpu.memory_space<vmem>>, %arg4: memref<36x128xf32, #tpu.memory_space<vmem>>) attributes {dimension_semantics = [#tpu.dimension_semantics<parallel>], iteration_bounds = array<i64: 1>, scalar_prefetch = 0 : i64, scratch_operands = 0 : i64, tpu.core_type = #tpu.core_type<tc>, window_params = [{transform_indices = @transform_0, window_bounds = array<i64: 36, 72>}, {pipeline_mode = #tpu.pipeline_mode<synchronous>, transform_indices = @transform_1, window_bounds = array<i64: 3, 72, 128>}, {pipeline_mode = #tpu.pipeline_mode<synchronous>, transform_indices = @transform_2, window_bounds = array<i64: 1, 128>}, {transform_indices = @transform_3, window_bounds = array<i64: 36, 128>}]} {
    %c0 = arith.constant 0 : index
    %c0_0 = arith.constant 0 : index
    %0 = vector.load %arg3[%c0, %c0_0] : memref<1x128xf32, #tpu.memory_space<vmem>>, vector<1x128xf32>
    %1 = vector.shape_cast %0 : vector<1x128xf32> to vector<1x128xf32>
    %2 = vector.broadcast %1 : vector<1x128xf32> to vector<34x128xf32>
    %c0_1 = arith.constant 0 : index
    %c0_2 = arith.constant 0 : index
    %3 = vector.load %arg1[%c0_1, %c0_2] : memref<36x72xbf16, #tpu.memory_space<vmem>>, vector<34x72xbf16>
    %c0_3 = arith.constant 0 : index
    %c0_4 = arith.constant 0 : index
    %c0_5 = arith.constant 0 : index
    %4 = vector.load %arg2[%c0_3, %c0_4, %c0_5] : memref<3x72x128xbf16, #tpu.memory_space<vmem>>, vector<1x72x128xbf16>
    %5 = vector.shape_cast %4 : vector<1x72x128xbf16> to vector<72x128xbf16>
    %cst = arith.constant dense<0.000000e+00> : vector<34x128xf32>
    %6 = tpu.matmul %3, %5, %cst {dimension_numbers = #tpu.dot_dimension_numbers<[1], [0], [0], [1], [0, 0, 1, 1], [], []>} : vector<34x72xbf16>, vector<72x128xbf16>, vector<34x128xf32> -> vector<34x128xf32>
    %7 = arith.addf %2, %6 : vector<34x128xf32>
    %c1 = arith.constant 1 : index
    %c0_6 = arith.constant 0 : index
    %8 = vector.load %arg1[%c1, %c0_6] : memref<36x72xbf16, #tpu.memory_space<vmem>>, vector<34x72xbf16>
    %c1_7 = arith.constant 1 : index
    %c0_8 = arith.constant 0 : index
    %c0_9 = arith.constant 0 : index
    %9 = vector.load %arg2[%c1_7, %c0_8, %c0_9] : memref<3x72x128xbf16, #tpu.memory_space<vmem>>, vector<1x72x128xbf16>
    %10 = vector.shape_cast %9 : vector<1x72x128xbf16> to vector<72x128xbf16>
    %cst_10 = arith.constant dense<0.000000e+00> : vector<34x128xf32>
    %11 = tpu.matmul %8, %10, %cst_10 {dimension_numbers = #tpu.dot_dimension_numbers<[1], [0], [0], [1], [0, 0, 1, 1], [], []>} : vector<34x72xbf16>, vector<72x128xbf16>, vector<34x128xf32> -> vector<34x128xf32>
    %12 = arith.addf %7, %11 : vector<34x128xf32>
    %c2 = arith.constant 2 : index
    %c0_11 = arith.constant 0 : index
    %13 = vector.load %arg1[%c2, %c0_11] : memref<36x72xbf16, #tpu.memory_space<vmem>>, vector<34x72xbf16>
    %c2_12 = arith.constant 2 : index
    %c0_13 = arith.constant 0 : index
    %c0_14 = arith.constant 0 : index
    %14 = vector.load %arg2[%c2_12, %c0_13, %c0_14] : memref<3x72x128xbf16, #tpu.memory_space<vmem>>, vector<1x72x128xbf16>
    %15 = vector.shape_cast %14 : vector<1x72x128xbf16> to vector<72x128xbf16>
    %cst_15 = arith.constant dense<0.000000e+00> : vector<34x128xf32>
    %16 = tpu.matmul %13, %15, %cst_15 {dimension_numbers = #tpu.dot_dimension_numbers<[1], [0], [0], [1], [0, 0, 1, 1], [], []>} : vector<34x72xbf16>, vector<72x128xbf16>, vector<34x128xf32> -> vector<34x128xf32>
    %17 = arith.addf %12, %16 : vector<34x128xf32>
    %c0_16 = arith.constant 0 : index
    %c0_17 = arith.constant 0 : index
    %18 = vector.load %arg4[%c0_16, %c0_17] : memref<36x128xf32, #tpu.memory_space<vmem>>, vector<34x128xf32>
    tpu.vector_store %arg4[%c0_16, %c0_17], %17 {strides = array<i32>} : memref<36x128xf32, #tpu.memory_space<vmem>>, vector<34x128xf32>,
    %cst_18 = arith.constant 0.000000e+00 : f32
    %19 = vector.broadcast %cst_18 : f32 to vector<2x128xf32>
    %c34 = arith.constant 34 : index
    %c0_19 = arith.constant 0 : index
    %20 = vector.load %arg4[%c34, %c0_19] : memref<36x128xf32, #tpu.memory_space<vmem>>, vector<2x128xf32>
    tpu.vector_store %arg4[%c34, %c0_19], %19 {strides = array<i32>} : memref<36x128xf32, #tpu.memory_space<vmem>>, vector<2x128xf32>,
    return
  }
  func.func @transform_0(%arg0: i32) -> (i32, i32) {
    %c0_i32 = arith.constant 0 : i32
    %c0_i32_0 = arith.constant 0 : i32
    return %arg0, %c0_i32 : i32, i32
  }
  func.func @transform_1(%arg0: i32) -> (i32, i32, i32) {
    %c0_i32 = arith.constant 0 : i32
    %c0_i32_0 = arith.constant 0 : i32
    %c0_i32_1 = arith.constant 0 : i32
    %c0_i32_2 = arith.constant 0 : i32
    return %c0_i32, %c0_i32_0, %c0_i32_1 : i32, i32, i32
  }
  func.func @transform_2(%arg0: i32) -> (i32, i32) {
    %c0_i32 = arith.constant 0 : i32
    %c0_i32_0 = arith.constant 0 : i32
    %c0_i32_1 = arith.constant 0 : i32
    return %c0_i32, %c0_i32_0 : i32, i32
  }
  func.func @transform_3(%arg0: i32) -> (i32, i32) {
    %c0_i32 = arith.constant 0 : i32
    %c0_i32_0 = arith.constant 0 : i32
    return %arg0, %c0_i32 : i32, i32
  }
}

</mosaic_0001>

<llo_original>
// kernel: torus_conv2d.1
$region0: #{torus_conv2d.1}
  #allocation0 [shape = 'u32[]', space=smem, size = 0x4, offset = 0x4, fixed_abs, tag = 'smem constant byte address 0x4 - core index']
  #allocation1 [shape = 'u32[144,128]{1,0:T(1,128)}', space=vmem, size = 0x12000, scoped, tag = 'internal scratch']
  %s0 = inlined_call_operand.vmem [shape: bf16[36,72], index: 0, kind: input, shape index: {}]
  %s1 = inlined_call_operand.vmem [shape: bf16[3,72,128], index: 1, kind: input, shape index: {}]
  %s2 = inlined_call_operand.vmem [shape: f32[1,128], index: 2, kind: input, shape index: {}]
  %s3 = inlined_call_operand.vmem [shape: f32[36,128], index: 3, kind: output, shape index: {}]
  %s4 = sld [smem:[#allocation0]]
  $region22: #{torus_conv2d.1} parent=0
    _
  %s6 = ssub.s32 1, %s4
  %s7 = scalar_select 0, %s6, %s4
  // Predicated region
  $region2: #{torus_conv2d.1} parent=0 // pred_check
    _
  $region3: #{torus_conv2d.1} parent=0 // pred_check_branch
    %9 = sbr.rel (0) target = $region5
  $region4: #{torus_conv2d.1} parent=0 // pred_region
    _
  $region5: #{torus_conv2d.1} parent=0 // pred_fallthru
    _
  // Predicated region
  $region6: #{torus_conv2d.1} parent=0 // pred_check
    _
  $region7: #{torus_conv2d.1} parent=0 // pred_check_branch
    %11 = sbr.rel (0) target = $region9
  $region8: #{torus_conv2d.1} parent=0 // pred_region
    _
  $region9: #{torus_conv2d.1} parent=0 // pred_fallthru
    _
  // Predicated region
  $region10: #{torus_conv2d.1} parent=0 // pred_check
    _
  $region11: #{torus_conv2d.1} parent=0 // pred_check_branch
    %13 = sbr.rel (0) target = $region13
  $region12: #{torus_conv2d.1} parent=0 // pred_region
    _
  $region13: #{torus_conv2d.1} parent=0 // pred_fallthru
    _
  %v15 = vld [vmem:[%s2] sm:$0x1]
  %v17 = vlaneseq
  %v18 = vshrl.u32 %v17, 7
  %v19 = vsub.s32 0, %v18
  %v20 = vrot.slane %v15, %v19
  %v22 = vld [vmem:[%s0] sm:$0xf]
  %v23 = vld [vmem:[%s0 + $0x4] sm:$0xf]
  %v24 = vld [vmem:[%s0 + $0x8] sm:$0xf]
  %v25 = vld [vmem:[%s0 + $0xc] sm:$0xf]
  %v26 = vld [vmem:[%s0 + $0x10] sm:$0x1]
  %v27 = vld [vmem:[%s1] sm:$0xf]
  %v28 = vld [vmem:[%s1 + $0x4] sm:$0xf]
  %v29 = vld [vmem:[%s1 + $0x8] sm:$0xf]
  %v30 = vld [vmem:[%s1 + $0xc] sm:$0xf]
  %v31 = vld [vmem:[%s1 + $0x10] sm:$0xf]
  %v32 = vld [vmem:[%s1 + $0x14] sm:$0xf]
  %v33 = vld [vmem:[%s1 + $0x18] sm:$0xf]
  %v34 = vld [vmem:[%s1 + $0x1c] sm:$0xf]
  %v35 = vld [vmem:[%s1 + $0x20] sm:$0xf]
  %v41 = vunpack.c.l.b16 %v22
  %v42 = vunpack.c.l.b16 %v23
  %v43 = vunpack.c.l.b16 %v24
  %v44 = vunpack.c.l.b16 %v25
  %v45 = vunpack.c.l.b16 %v26
  %v46 = vpack.c.b16 %v42, %v41
  %v47 = vpack.c.b16 %v44, %v43
  %v48 = vpack.c.b16 %v45, %v45
  %v58 = vunpack.c.l.b16 %v27
  %v59 = vunpack.c.l.b16 %v28
  %v60 = vunpack.c.l.b16 %v29
  %v61 = vunpack.c.l.b16 %v30
  %v62 = vunpack.c.l.b16 %v31
  %v63 = vunpack.c.l.b16 %v32
  %v64 = vunpack.c.l.b16 %v33
  %v65 = vunpack.c.l.b16 %v34
  %v66 = vunpack.c.l.b16 %v35
  %v67 = vpack.c.b16 %v59, %v58
  %v68 = vpack.c.b16 %v61, %v60
  %v69 = vpack.c.b16 %v63, %v62
  %v70 = vpack.c.b16 %v65, %v64
  %v71 = vpack.c.b16 %v66, %v66
  %vm76 = vcmask 588800
  %v78 = vsel %vm76, %v46, 0
  %v81 = vsel %vm76, %v47, 0
  %v84 = vsel %vm76, %v48, 0
  %vm86 = vcmask 1043456
  %v88 = vsel %vm86, %v71, 0
  %90 = vmatprep.subr.bf16.mxu0 0
  %91 = vmatpush1.bf16.msra.mxu0 0
  %92 = vmatprep.subr.bf16.mxu0 0
  %93 = vmatpush1.bf16.msra.mxu0 0
  %94 = vmatprep.subr.bf16.mxu0 0
  %95 = vmatpush1.bf16.msra.mxu0 0
  %96 = vmatprep.subr.bf16.mxu0 0
  %97 = vmatpush1.bf16.msra.mxu0 %v88
  %98 = vmatprep.subr.bf16.mxu0 0
  %99 = vmatpush1.bf16.msra.mxu0 %v70
  %100 = vmatprep.subr.bf16.mxu0 0
  %101 = vmatpush1.bf16.msra.mxu0 %v69
  %102 = vmatprep.subr.bf16.mxu0 0
  %103 = vmatpush1.bf16.msra.mxu0 %v68
  %104 = vmatprep.subr.bf16.mxu0 0
  %105 = vmatpush1.bf16.msra.mxu0 %v67
  %106 = vmatprep.subr.bf16.mxu0 0
  %107 = vmatpush2.bf16.msra.mxu0 0
  %108 = vmatprep.subr.bf16.mxu0 0
  %109 = vmatpush2.bf16.msra.mxu0 0
  %110 = vmatprep.subr.bf16.mxu0 0
  %111 = vmatpush2.bf16.msra.mxu0 0
  %112 = vmatprep.subr.bf16.mxu0 0
  %113 = vmatpush2.bf16.msra.mxu0 0
  %114 = vmatprep.subr.bf16.mxu0 0
  %115 = vmatpush2.bf16.msra.mxu0 0
  %116 = vmatprep.subr.bf16.mxu0 0
  %117 = vmatpush2.bf16.msra.mxu0 0
  %118 = vmatprep.subr.bf16.mxu0 0
  %119 = vmatpush2.bf16.msra.mxu0 0
  %120 = vmatprep.subr.bf16.mxu0 0
  %121 = vmatpush2.bf16.msra.mxu0 0
  %122 = vmatprep.mubr.bf16.mxu0 0
  %123 = vmatmul.mubr.bf16.gmra.mxu0 %v78
  %v124 = vpop.f32.mrf.mxu0
  %v125 = vadd.f32 0.0, %v124
  %v126 = vpop.f32.mrf.mxu0
  %v127 = vpop.f32.mrf.mxu0
  %v128 = vadd.f32 0.0, %v127
  %v129 = vpop.f32.mrf.mxu0
  %130 = vmatprep.mubr.bf16.mxu0 0
  %131 = vmatmul.mubr.bf16.gmra.mxu0 %v81
  %v132 = vpop.f32.mrf.mxu0
  %v133 = vadd.f32 0.0, %v132
  %v134 = vpop.f32.mrf.mxu0
  %v135 = vpop.f32.mrf.mxu0
  %v136 = vadd.f32 0.0, %v135
  %v137 = vpop.f32.mrf.mxu0
  %138 = vmatprep.mubr.bf16.mxu0 0
  %139 = vmatmul.mubr.bf16.gmra.mxu0 %v84
  %v140 = vpop.f32.mrf.mxu0
  %v141 = vadd.f32 0.0, %v140
  %v142 = vpop.f32.mrf.mxu0
  %v143 = vpop.f32.mrf.mxu0
  %v144 = vpop.f32.mrf.mxu0
  %145 = vdwg.mxu0
  %v146 = vadd.f32 %v20, %v125
  %v147 = vadd.f32 %v20, %v128
  %v148 = vadd.f32 %v20, %v133
  %v149 = vadd.f32 %v20, %v136
  %v150 = vadd.f32 %v20, %v141
  %v151 = vld [vmem:[%s0 + $0x10] sm:$0x3]
  %s152 = scalar_lea.vmem %s1, 36
  %v153 = vld [vmem:[%s152] sm:$0xf]
  %v154 = vld [vmem:[%s152 + $0x4] sm:$0xf]
  %v155 = vld [vmem:[%s152 + $0x8] sm:$0xf]
  %v156 = vld [vmem:[%s152 + $0xc] sm:$0xf]
  %v157 = vld [vmem:[%s152 + $0x10] sm:$0xf]
  %v158 = vld [vmem:[%s152 + $0x14] sm:$0xf]
  %v159 = vld [vmem:[%s152 + $0x18] sm:$0xf]
  %v160 = vld [vmem:[%s152 + $0x1c] sm:$0xf]
  %v161 = vld [vmem:[%s152 + $0x20] sm:$0xf]
  %v163 = vunpack.c.l.b16 %v151
  %v164 = vpack.c.b16 %v163, %v163
  %vm165 = vsmask.f32 7424
  %v166 = vshrl.u32 %v46, 16
  %v168 = vshll.u32 %v46, 16
  %v170 = vrot.slane %v168, 1
  %v171 = vor.u32 %v166, %v170
  %v172 = vshll.u32 %v47, 16
  %v174 = vrot.slane %v172, 1
  %v175 = vsel %vm165, %v171, %v174
  %v176 = vshrl.u32 %v47, 16
  %v178 = vor.u32 %v176, %v174
  %v180 = vshll.u32 %v164, 16
  %v182 = vrot.slane %v180, 1
  %v183 = vsel %vm165, %v178, %v182
  %v184 = vshrl.u32 %v164, 16
  %v186 = vor.u32 %v184, %v182
  %v196 = vunpack.c.l.b16 %v153
  %v197 = vunpack.c.l.b16 %v154
  %v198 = vunpack.c.l.b16 %v155
  %v199 = vunpack.c.l.b16 %v156
  %v200 = vunpack.c.l.b16 %v157
  %v201 = vunpack.c.l.b16 %v158
  %v202 = vunpack.c.l.b16 %v159
  %v203 = vunpack.c.l.b16 %v160
  %v204 = vunpack.c.l.b16 %v161
  %v205 = vpack.c.b16 %v197, %v196
  %v206 = vpack.c.b16 %v199, %v198
  %v207 = vpack.c.b16 %v201, %v200
  %v208 = vpack.c.b16 %v203, %v202
  %v209 = vpack.c.b16 %v204, %v204
  %v215 = vsel %vm76, %v175, 0
  %v218 = vsel %vm76, %v183, 0
  %v221 = vsel %vm76, %v186, 0
  %v224 = vsel %vm86, %v209, 0
  %226 = vmatprep.subr.bf16.mxu0 0
  %227 = vmatpush1.bf16.msra.mxu0 0
  %228 = vmatprep.subr.bf16.mxu0 0
  %229 = vmatpush1.bf16.msra.mxu0 0
  %230 = vmatprep.subr.bf16.mxu0 0
  %231 = vmatpush1.bf16.msra.mxu0 0
  %232 = vmatprep.subr.bf16.mxu0 0
  %233 = vmatpush1.bf16.msra.mxu0 %v224
  %234 = vmatprep.subr.bf16.mxu0 0
  %235 = vmatpush1.bf16.msra.mxu0 %v208
  %236 = vmatprep.subr.bf16.mxu0 0
  %237 = vmatpush1.bf16.msra.mxu0 %v207
  %238 = vmatprep.subr.bf16.mxu0 0
  %239 = vmatpush1.bf16.msra.mxu0 %v206
  %240 = vmatprep.subr.bf16.mxu0 0
  %241 = vmatpush1.bf16.msra.mxu0 %v205
  %242 = vmatprep.subr.bf16.mxu0 0
  %243 = vmatpush2.bf16.msra.mxu0 0
  %244 = vmatprep.subr.bf16.mxu0 0
  %245 = vmatpush2.bf16.msra.mxu0 0
  %246 = vmatprep.subr.bf16.mxu0 0
  %247 = vmatpush2.bf16.msra.mxu0 0
  %248 = vmatprep.subr.bf16.mxu0 0
  %249 = vmatpush2.bf16.msra.mxu0 0
  %250 = vmatprep.subr.bf16.mxu0 0
  %251 = vmatpush2.bf16.msra.mxu0 0
  %252 = vmatprep.subr.bf16.mxu0 0
  %253 = vmatpush2.bf16.msra.mxu0 0
  %254 = vmatprep.subr.bf16.mxu0 0
  %255 = vmatpush2.bf16.msra.mxu0 0
  %256 = vmatprep.subr.bf16.mxu0 0
  %257 = vmatpush2.bf16.msra.mxu0 0
  %258 = vmatprep.mubr.bf16.mxu0 0
  %259 = vmatmul.mubr.bf16.gmra.mxu0 %v215
  %v260 = vpop.f32.mrf.mxu0
  %v261 = vadd.f32 0.0, %v260
  %v262 = vpop.f32.mrf.mxu0
  %v263 = vpop.f32.mrf.mxu0
  %v264 = vadd.f32 0.0, %v263
  %v265 = vpop.f32.mrf.mxu0
  %266 = vmatprep.mubr.bf16.mxu0 0
  %267 = vmatmul.mubr.bf16.gmra.mxu0 %v218
  %v268 = vpop.f32.mrf.mxu0
  %v269 = vadd.f32 0.0, %v268
  %v270 = vpop.f32.mrf.mxu0
  %v271 = vpop.f32.mrf.mxu0
  %v272 = vadd.f32 0.0, %v271
  %v273 = vpop.f32.mrf.mxu0
  %274 = vmatprep.mubr.bf16.mxu0 0
  %275 = vmatmul.mubr.bf16.gmra.mxu0 %v221
  %v276 = vpop.f32.mrf.mxu0
  %v277 = vadd.f32 0.0, %v276
  %v278 = vpop.f32.mrf.mxu0
  %v279 = vpop.f32.mrf.mxu0
  %v280 = vpop.f32.mrf.mxu0
  %281 = vdwg.mxu0
  %v282 = vadd.f32 %v146, %v261
  %v283 = vadd.f32 %v147, %v264
  %v284 = vadd.f32 %v148, %v269
  %v285 = vadd.f32 %v149, %v272
  %v286 = vadd.f32 %v150, %v277
  %v287 = vld [vmem:[%s0] sm:$0xe]
  %s288 = scalar_lea.vmem %s1, 72
  %v289 = vld [vmem:[%s288] sm:$0xf]
  %v290 = vld [vmem:[%s288 + $0x4] sm:$0xf]
  %v291 = vld [vmem:[%s288 + $0x8] sm:$0xf]
  %v292 = vld [vmem:[%s288 + $0xc] sm:$0xf]
  %v293 = vld [vmem:[%s288 + $0x10] sm:$0xf]
  %v294 = vld [vmem:[%s288 + $0x14] sm:$0xf]
  %v295 = vld [vmem:[%s288 + $0x18] sm:$0xf]
  %v296 = vld [vmem:[%s288 + $0x1c] sm:$0xf]
  %v297 = vld [vmem:[%s288 + $0x20] sm:$0xf]
  %v299 = vunpack.c.l.b16 %v287
  %v300 = vpack.c.b16 %v42, %v299
  %vm301 = vcmask 1046528
  %v302 = vrot.slane %v300, 1
  %v303 = vrot.slane %v47, 1
  %v304 = vsel %vm301, %v302, %v303
  %v305 = vrot.slane %v164, 1
  %v306 = vsel %vm301, %v303, %v305
  %v316 = vunpack.c.l.b16 %v289
  %v317 = vunpack.c.l.b16 %v290
  %v318 = vunpack.c.l.b16 %v291
  %v319 = vunpack.c.l.b16 %v292
  %v320 = vunpack.c.l.b16 %v293
  %v321 = vunpack.c.l.b16 %v294
  %v322 = vunpack.c.l.b16 %v295
  %v323 = vunpack.c.l.b16 %v296
  %v324 = vunpack.c.l.b16 %v297
  %v325 = vpack.c.b16 %v317, %v316
  %v326 = vpack.c.b16 %v319, %v318
  %v327 = vpack.c.b16 %v321, %v320
  %v328 = vpack.c.b16 %v323, %v322
  %v329 = vpack.c.b16 %v324, %v324
  %v335 = vsel %vm76, %v304, 0
  %v338 = vsel %vm76, %v306, 0
  %v341 = vsel %vm76, %v305, 0
  %v344 = vsel %vm86, %v329, 0
  %346 = vmatprep.subr.bf16.mxu0 0
  %347 = vmatpush1.bf16.msra.mxu0 0
  %348 = vmatprep.subr.bf16.mxu0 0
  %349 = vmatpush1.bf16.msra.mxu0 0
  %350 = vmatprep.subr.bf16.mxu0 0
  %351 = vmatpush1.bf16.msra.mxu0 0
  %352 = vmatprep.subr.bf16.mxu0 0
  %353 = vmatpush1.bf16.msra.mxu0 %v344
  %354 = vmatprep.subr.bf16.mxu0 0
  %355 = vmatpush1.bf16.msra.mxu0 %v328
  %356 = vmatprep.subr.bf16.mxu0 0
  %357 = vmatpush1.bf16.msra.mxu0 %v327
  %358 = vmatprep.subr.bf16.mxu0 0
  %359 = vmatpush1.bf16.msra.mxu0 %v326
  %360 = vmatprep.subr.bf16.mxu0 0
  %361 = vmatpush1.bf16.msra.mxu0 %v325
  %362 = vmatprep.subr.bf16.mxu0 0
  %363 = vmatpush2.bf16.msra.mxu0 0
  %364 = vmatprep.subr.bf16.mxu0 0
  %365 = vmatpush2.bf16.msra.mxu0 0
  %366 = vmatprep.subr.bf16.mxu0 0
  %367 = vmatpush2.bf16.msra.mxu0 0
  %368 = vmatprep.subr.bf16.mxu0 0
  %369 = vmatpush2.bf16.msra.mxu0 0
  %370 = vmatprep.subr.bf16.mxu0 0
  %371 = vmatpush2.bf16.msra.mxu0 0
  %372 = vmatprep.subr.bf16.mxu0 0
  %373 = vmatpush2.bf16.msra.mxu0 0
  %374 = vmatprep.subr.bf16.mxu0 0
  %375 = vmatpush2.bf16.msra.mxu0 0
  %376 = vmatprep.subr.bf16.mxu0 0
  %377 = vmatpush2.bf16.msra.mxu0 0
  %378 = vmatprep.mubr.bf16.mxu0 0
  %379 = vmatmul.mubr.bf16.gmra.mxu0 %v335
  %v380 = vpop.f32.mrf.mxu0
  %v381 = vadd.f32 0.0, %v380
  %v382 = vpop.f32.mrf.mxu0
  %v383 = vpop.f32.mrf.mxu0
  %v384 = vadd.f32 0.0, %v383
  %v385 = vpop.f32.mrf.mxu0
  %386 = vmatprep.mubr.bf16.mxu0 0
  %387 = vmatmul.mubr.bf16.gmra.mxu0 %v338
  %v388 = vpop.f32.mrf.mxu0
  %v389 = vadd.f32 0.0, %v388
  %v390 = vpop.f32.mrf.mxu0
  %v391 = vpop.f32.mrf.mxu0
  %v392 = vadd.f32 0.0, %v391
  %v393 = vpop.f32.mrf.mxu0
  %394 = vmatprep.mubr.bf16.mxu0 0
  %395 = vmatmul.mubr.bf16.gmra.mxu0 %v341
  %v396 = vpop.f32.mrf.mxu0
  %v397 = vadd.f32 0.0, %v396
  %v398 = vpop.f32.mrf.mxu0
  %v399 = vpop.f32.mrf.mxu0
  %v400 = vpop.f32.mrf.mxu0
  %401 = vdwg.mxu0
  %v402 = vadd.f32 %v282, %v381
  %v403 = vadd.f32 %v283, %v384
  %v404 = vadd.f32 %v284, %v389
  %v405 = vadd.f32 %v285, %v392
  %v406 = vadd.f32 %v286, %v397
  %407 = vst [vmem:[%s3] sm:$0xff] %v402
  %408 = vst [vmem:[%s3 + $0x8] sm:$0xff] %v403
  %409 = vst [vmem:[%s3 + $0x10] sm:$0xff] %v404
  %410 = vst [vmem:[%s3 + $0x18] sm:$0xff] %v405
  %411 = vst [vmem:[%s3 + $0x20] sm:$0x3] %v406
  %412 = vst [vmem:[%s3 + $0x22] sm:$0x3] 0.0
  // Predicated region
  $region14: #{torus_conv2d.1} parent=0 // pred_check
    _
  $region15: #{torus_conv2d.1} parent=0 // pred_check_branch
    %414 = sbr.rel (0) target = $region17
  $region16: #{torus_conv2d.1} parent=0 // pred_region
    _
  $region17: #{torus_conv2d.1} parent=0 // pred_fallthru
    _
  // Predicated region
  $region18: #{torus_conv2d.1} parent=0 // pred_check
    _
  $region19: #{torus_conv2d.1} parent=0 // pred_check_branch
    %416 = sbr.rel (0) target = $region21
  $region20: #{torus_conv2d.1} parent=0 // pred_region
    _
  $region21: #{torus_conv2d.1} parent=0 // pred_fallthru
    _

</llo_original>
